<compile_context>
chip_gen: v6e
topology: v6e:2x2x1
jax: 0.10.0
libtpu: 0.0.40
codegen_flags: <defaults>
</compile_context>

<pallas_src>
import math

import jax
import jax.numpy as jnp
from jax.experimental import pallas as pl
from jax.experimental.pallas import tpu as pltpu

LN_EPS = 1e-5


def _patch_merge_kernel(even_ref, odd_ref, w_ref, bias_ref, o_ref):
    """Fused LayerNorm(4C) + Linear(4C -> 2C, bias=False) on one token tile.

    even_ref / odd_ref : (th, W2, 2C)   raw inputs; channel order [x0|x2], [x1|x3]
    w_ref              : (4C, 2C)       channel-permuted, gamma-folded weight
    bias_ref           : (1, 2C)        beta @ W  (f32)
    o_ref              : (th*W2, 2C)
    """
    th, w2, c2 = even_ref.shape
    tok = th * w2
    c4 = 2 * c2

    xe = even_ref[...].reshape(tok, c2).astype(jnp.float32)
    xo = odd_ref[...].reshape(tok, c2).astype(jnp.float32)

    # Single-pass LayerNorm statistics over the full 4C channels.
    s = jnp.sum(xe, axis=-1, keepdims=True) + jnp.sum(xo, axis=-1, keepdims=True)
    ss = (jnp.sum(xe * xe, axis=-1, keepdims=True)
          + jnp.sum(xo * xo, axis=-1, keepdims=True))
    mean = s * (1.0 / c4)
    var = ss * (1.0 / c4) - mean * mean
    inv = jax.lax.rsqrt(var + LN_EPS)

    mdt = w_ref.dtype  # bf16 on the fast path, f32 on the fallback path
    en = ((xe - mean) * inv).astype(mdt)
    on = ((xo - mean) * inv).astype(mdt)

    # Split the 4C contraction into the two source-row halves; avoids building a
    # (tok, 4C) lane-concat in VMEM.  gamma is already folded into w_ref.
    acc = jnp.dot(en, w_ref[0:c2, :], preferred_element_type=jnp.float32)
    acc = acc + jnp.dot(on, w_ref[c2:c4, :], preferred_element_type=jnp.float32)
    o_ref[...] = (acc + bias_ref[...]).astype(o_ref.dtype)


def _fold_params(w_red, gamma, beta, C, matmul_dtype):
    """Permute channels to the kernel's [x0|x2|x1|x3] order and fold gamma/beta."""
    perm = jnp.concatenate([
        jnp.arange(0, C), jnp.arange(2 * C, 3 * C),
        jnp.arange(C, 2 * C), jnp.arange(3 * C, 4 * C)])
    g32 = gamma.astype(jnp.float32)
    b32 = beta.astype(jnp.float32)
    w32 = w_red.astype(jnp.float32)
    w_fold = (g32[perm][:, None] * w32[perm, :]).astype(matmul_dtype)   # (4C, 2C)
    bias = (b32[None, :] @ w32).astype(jnp.float32)                     # (1, 2C)
    return w_fold, bias


def patch_merging_pallas(x, x_size, w_red, gamma, beta, *,
                         target_tokens=1024,
                         matmul_dtype=jnp.bfloat16,
                         vmem_tile_budget=40 << 20):
    """x: (B, H*W, C) -> (B, (H/2)*(W/2), 2*C). Matches PyTorch PatchMerging."""
    H, W = x_size
    B, L, C = x.shape
    assert L == H * W, "input feature has wrong size"
    assert H % 2 == 0 and W % 2 == 0, f"x size ({H}*{W}) are not even."

    H2, W2 = H // 2, W // 2
    C2, C4 = 2 * C, 4 * C
    Lp = H2 * W2
    out_dtype = x.dtype

    # Free (contiguous) reshape.  Per merged token (i, j):
    #   x_r[b, i, 0, j, :] = [x0 | x2]   (source image row 2i)
    #   x_r[b, i, 1, j, :] = [x1 | x3]   (source image row 2i+1)
    # The strided even/odd gather is done by the kernel's input DMAs.
    x_r = x.reshape(B, H2, 2, W2, C2)

    w_fold, bias = _fold_params(w_red, gamma, beta, C, matmul_dtype)

    in_isz = x.dtype.itemsize
    out_isz = jnp.dtype(out_dtype).itemsize
    w_isz = jnp.dtype(matmul_dtype).itemsize

    # ---- tile selection: tokens per grid step = th * W2 ----------------------
    # Working set per token: double-buffered even/odd inputs, double-buffered
    # output, plus f32 intermediates inside the kernel (rough upper bound).
    per_tok = 2 * (C4 * in_isz) + 2 * (C2 * out_isz) + 4 * (C4 * 4)
    tok_cap = max(W2, vmem_tile_budget // per_tok)
    tok = min(target_tokens, tok_cap)
    th = max(1, min(H2, tok // W2 if W2 <= tok else 1))

    # Keep the output block's sublane dim (th*W2) a multiple of 8 when tiling.
    sub = 8 // math.gcd(W2, 8)
    if th < H2:
        th = max(sub, (th // sub) * sub)
        th = min(th, H2)

    n_row_tiles = pl.cdiv(H2, th)
    # Keep >= 2 grid steps so both v7x TensorCores get work.
    if B * n_row_tiles < 2 and H2 >= 2 * sub:
        th = max(sub, ((H2 // 2) // sub) * sub)
        n_row_tiles = pl.cdiv(H2, th)

    # ---- explicit VMEM budget (double buffers + resident weight + temps) -----
    blk_in = th * W2 * C2 * in_isz          # one of even / odd per step
    blk_out = th * W2 * C2 * out_isz
    temps = th * W2 * C4 * 4 * 4            # f32 working arrays (upper bound)
    resident = C4 * C2 * w_isz + C2 * 4
    needed = 2 * (2 * blk_in) + 2 * blk_out + resident + temps
    # Cap at 56 MiB so the request is also valid on v7x's 64 MiB physical VMEM.
    vmem_limit = int(min(max(int(needed * 1.25) + (4 << 20), 32 << 20), 56 << 20))

    out = pl.pallas_call(
        _patch_merge_kernel,
        out_shape=jax.ShapeDtypeStruct((B, Lp, C2), out_dtype),
        grid_spec=pltpu.PrefetchScalarGridSpec(
            num_scalar_prefetch=0,
            grid=(B, n_row_tiles),
            in_specs=[
                # even source rows (h = 2i):   channels [x0 | x2]
                pl.BlockSpec((pl.Squeezed(), th, pl.Squeezed(), W2, C2),
                             lambda b, r: (b, r, 0, 0, 0)),
                # odd source rows (h = 2i+1):  channels [x1 | x3]
                pl.BlockSpec((pl.Squeezed(), th, pl.Squeezed(), W2, C2),
                             lambda b, r: (b, r, 1, 0, 0)),
                # gamma-folded weight, resident across the whole grid
                pl.BlockSpec((C4, C2), lambda b, r: (0, 0)),
                # beta-folded bias row
                pl.BlockSpec((1, C2), lambda b, r: (0, 0)),
            ],
            out_specs=pl.BlockSpec((pl.Squeezed(), th * W2, C2),
                                   lambda b, r: (b, r, 0)),
        ),
        compiler_params=pltpu.CompilerParams(
            dimension_semantics=("parallel", "parallel"),
            vmem_limit_bytes=vmem_limit,
        ),
    )(x_r, x_r, w_fold, bias)

    return out


def patch_merging_ref(x, x_size, w_red, gamma, beta):
    H, W = x_size
    B, L, C = x.shape
    xv = x.reshape(B, H, W, C)
    x0 = xv[:, 0::2, 0::2, :]
    x1 = xv[:, 1::2, 0::2, :]
    x2 = xv[:, 0::2, 1::2, :]
    x3 = xv[:, 1::2, 1::2, :]
    xm = jnp.concatenate([x0, x1, x2, x3], axis=-1).reshape(B, -1, 4 * C)
    mean = jnp.mean(xm, axis=-1, keepdims=True)
    var = jnp.mean(jnp.square(xm - mean), axis=-1, keepdims=True)
    xn = (xm - mean) / jnp.sqrt(var + LN_EPS)
    y = xn * gamma + beta
    return jnp.einsum("blk,kn->bln", y, w_red)


if __name__ == "__main__":
    B, C, H, W = 2, 4, 16, 16
    key = jax.random.PRNGKey(0)
    kx, kw, kg, kb = jax.random.split(key, 4)

    x = jax.random.normal(kx, (B, H * W, C), dtype=jnp.float32)
    # reduction: nn.Linear(4*dim, 2*dim, bias=False) -> weight (2C, 4C) in torch;
    # stored here transposed as (4C, 2C) for y @ W.
    w_red = jax.random.normal(kw, (4 * C, 2 * C), dtype=jnp.float32) * 0.1
    gamma = 1.0 + 0.1 * jax.random.normal(kg, (4 * C,), dtype=jnp.float32)
    beta = 0.1 * jax.random.normal(kb, (4 * C,), dtype=jnp.float32)

    ref = patch_merging_ref(x, (H, W), w_red, gamma, beta)

    # Fast path: bf16 MXU matmul, f32 LN statistics and accumulation.
    out = jax.block_until_ready(patch_merging_pallas(x, (H, W), w_red, gamma, beta))
    assert out.shape == (B, (H // 2) * (W // 2), 2 * C)
    assert jnp.allclose(out, ref, atol=3e-2, rtol=3e-2)

    # All-f32 fallback path, tight tolerance.
    out32 = jax.block_until_ready(
        patch_merging_pallas(x, (H, W), w_red, gamma, beta,
                             matmul_dtype=jnp.float32))
    assert jnp.allclose(out32, ref, atol=1e-4, rtol=1e-4)

    print("KERNEL_OK")
</pallas_src>

<mosaic_0001>
module attributes {stable_mosaic.version = 11 : i64} {
  func.func @_patch_merge_kernel(%arg0: i32, %arg1: i32, %arg2: memref<1x8x1x8x8xf32, #tpu.memory_space<vmem>>, %arg3: memref<1x8x1x8x8xf32, #tpu.memory_space<vmem>>, %arg4: memref<16x8xbf16, #tpu.memory_space<vmem>>, %arg5: memref<1x8xf32, #tpu.memory_space<vmem>>, %arg6: memref<1x64x8xf32, #tpu.memory_space<vmem>>) attributes {dimension_semantics = [#tpu.dimension_semantics<parallel>, #tpu.dimension_semantics<parallel>], iteration_bounds = array<i64: 2, 1>, scalar_prefetch = 0 : i64, scratch_operands = 0 : i64, tpu.core_type = #tpu.core_type<tc>, window_params = [{transform_indices = @transform_0, window_bounds = array<i64: 1, 8, 1, 8, 8>}, {transform_indices = @transform_1, window_bounds = array<i64: 1, 8, 1, 8, 8>}, {pipeline_mode = #tpu.pipeline_mode<synchronous>, transform_indices = @transform_2, window_bounds = array<i64: 16, 8>}, {pipeline_mode = #tpu.pipeline_mode<synchronous>, transform_indices = @transform_3, window_bounds = array<i64: 1, 8>}, {transform_indices = @transform_4, window_bounds = array<i64: 1, 64, 8>}]} {
    %c0 = arith.constant 0 : index
    %c0_0 = arith.constant 0 : index
    %c0_1 = arith.constant 0 : index
    %c0_2 = arith.constant 0 : index
    %c0_3 = arith.constant 0 : index
    %0 = vector.load %arg2[%c0, %c0_0, %c0_1, %c0_2, %c0_3] : memref<1x8x1x8x8xf32, #tpu.memory_space<vmem>>, vector<1x8x1x8x8xf32>
    %1 = vector.shape_cast %0 : vector<1x8x1x8x8xf32> to vector<8x8x8xf32>
    %2 = vector.shape_cast %1 : vector<8x8x8xf32> to vector<64x8xf32>
    %c0_4 = arith.constant 0 : index
    %c0_5 = arith.constant 0 : index
    %c0_6 = arith.constant 0 : index
    %c0_7 = arith.constant 0 : index
    %c0_8 = arith.constant 0 : index
    %3 = vector.load %arg3[%c0_4, %c0_5, %c0_6, %c0_7, %c0_8] : memref<1x8x1x8x8xf32, #tpu.memory_space<vmem>>, vector<1x8x1x8x8xf32>
    %4 = vector.shape_cast %3 : vector<1x8x1x8x8xf32> to vector<8x8x8xf32>
    %5 = vector.shape_cast %4 : vector<8x8x8xf32> to vector<64x8xf32>
    %cst = arith.constant dense<0.000000e+00> : vector<64xf32>
    %6 = vector.multi_reduction <add>, %2, %cst [1] : vector<64x8xf32> to vector<64xf32>
    %7 = vector.shape_cast %6 : vector<64xf32> to vector<64x1xf32>
    %cst_9 = arith.constant dense<0.000000e+00> : vector<64xf32>
    %8 = vector.multi_reduction <add>, %5, %cst_9 [1] : vector<64x8xf32> to vector<64xf32>
    %9 = vector.shape_cast %8 : vector<64xf32> to vector<64x1xf32>
    %10 = arith.addf %7, %9 : vector<64x1xf32>
    %11 = arith.mulf %2, %2 : vector<64x8xf32>
    %cst_10 = arith.constant dense<0.000000e+00> : vector<64xf32>
    %12 = vector.multi_reduction <add>, %11, %cst_10 [1] : vector<64x8xf32> to vector<64xf32>
    %13 = vector.shape_cast %12 : vector<64xf32> to vector<64x1xf32>
    %14 = arith.mulf %5, %5 : vector<64x8xf32>
    %cst_11 = arith.constant dense<0.000000e+00> : vector<64xf32>
    %15 = vector.multi_reduction <add>, %14, %cst_11 [1] : vector<64x8xf32> to vector<64xf32>
    %16 = vector.shape_cast %15 : vector<64xf32> to vector<64x1xf32>
    %17 = arith.addf %13, %16 : vector<64x1xf32>
    %cst_12 = arith.constant 6.250000e-02 : f32
    %18 = vector.broadcast %cst_12 : f32 to vector<64x1xf32>
    %19 = arith.mulf %10, %18 : vector<64x1xf32>
    %cst_13 = arith.constant 6.250000e-02 : f32
    %20 = vector.broadcast %cst_13 : f32 to vector<64x1xf32>
    %21 = arith.mulf %17, %20 : vector<64x1xf32>
    %22 = arith.mulf %19, %19 : vector<64x1xf32>
    %23 = arith.subf %21, %22 : vector<64x1xf32>
    %cst_14 = arith.constant 9.99999974E-6 : f32
    %24 = vector.broadcast %cst_14 : f32 to vector<64x1xf32>
    %25 = arith.addf %23, %24 : vector<64x1xf32>
    %26 = math.rsqrt %25 : vector<64x1xf32>
    %27 = vector.broadcast %19 : vector<64x1xf32> to vector<64x8xf32>
    %28 = arith.subf %2, %27 : vector<64x8xf32>
    %29 = vector.broadcast %26 : vector<64x1xf32> to vector<64x8xf32>
    %30 = arith.mulf %28, %29 : vector<64x8xf32>
    %31 = arith.truncf %30 : vector<64x8xf32> to vector<64x8xbf16>
    %32 = vector.broadcast %19 : vector<64x1xf32> to vector<64x8xf32>
    %33 = arith.subf %5, %32 : vector<64x8xf32>
    %34 = vector.broadcast %26 : vector<64x1xf32> to vector<64x8xf32>
    %35 = arith.mulf %33, %34 : vector<64x8xf32>
    %36 = arith.truncf %35 : vector<64x8xf32> to vector<64x8xbf16>
    %c0_15 = arith.constant 0 : index
    %c0_16 = arith.constant 0 : index
    %37 = vector.load %arg4[%c0_15, %c0_16] : memref<16x8xbf16, #tpu.memory_space<vmem>>, vector<8x8xbf16>
    %cst_17 = arith.constant dense<0.000000e+00> : vector<64x8xf32>
    %38 = tpu.matmul %31, %37, %cst_17 {dimension_numbers = #tpu.dot_dimension_numbers<[1], [0], [0], [1], [0, 0, 1, 1], [], []>} : vector<64x8xbf16>, vector<8x8xbf16>, vector<64x8xf32> -> vector<64x8xf32>
    %c8 = arith.constant 8 : index
    %c0_18 = arith.constant 0 : index
    %39 = vector.load %arg4[%c8, %c0_18] : memref<16x8xbf16, #tpu.memory_space<vmem>>, vector<8x8xbf16>
    %cst_19 = arith.constant dense<0.000000e+00> : vector<64x8xf32>
    %40 = tpu.matmul %36, %39, %cst_19 {dimension_numbers = #tpu.dot_dimension_numbers<[1], [0], [0], [1], [0, 0, 1, 1], [], []>} : vector<64x8xbf16>, vector<8x8xbf16>, vector<64x8xf32> -> vector<64x8xf32>
    %41 = arith.addf %38, %40 : vector<64x8xf32>
    %c0_20 = arith.constant 0 : index
    %c0_21 = arith.constant 0 : index
    %42 = vector.load %arg5[%c0_20, %c0_21] : memref<1x8xf32, #tpu.memory_space<vmem>>, vector<1x8xf32>
    %43 = vector.broadcast %42 : vector<1x8xf32> to vector<64x8xf32>
    %44 = arith.addf %41, %43 : vector<64x8xf32>
    %c0_22 = arith.constant 0 : index
    %c0_23 = arith.constant 0 : index
    %c0_24 = arith.constant 0 : index
    %45 = vector.load %arg6[%c0_22, %c0_23, %c0_24] : memref<1x64x8xf32, #tpu.memory_space<vmem>>, vector<1x64x8xf32>
    %46 = vector.shape_cast %45 : vector<1x64x8xf32> to vector<64x8xf32>
    %47 = vector.shape_cast %44 : vector<64x8xf32> to vector<1x64x8xf32>
    tpu.vector_store %arg6[%c0_22, %c0_23, %c0_24], %47 {strides = array<i32>} : memref<1x64x8xf32, #tpu.memory_space<vmem>>, vector<1x64x8xf32>,
    return
  }
  func.func @transform_0(%arg0: i32, %arg1: i32) -> (i32, i32, i32, i32, i32) {
    %c0_i32 = arith.constant 0 : i32
    %c0_i32_0 = arith.constant 0 : i32
    %c0_i32_1 = arith.constant 0 : i32
    %c0_i32_2 = arith.constant 0 : i32
    return %arg0, %arg1, %c0_i32, %c0_i32_0, %c0_i32_1 : i32, i32, i32, i32, i32
  }
  func.func @transform_1(%arg0: i32, %arg1: i32) -> (i32, i32, i32, i32, i32) {
    %c1_i32 = arith.constant 1 : i32
    %c0_i32 = arith.constant 0 : i32
    %c0_i32_0 = arith.constant 0 : i32
    %c0_i32_1 = arith.constant 0 : i32
    return %arg0, %arg1, %c1_i32, %c0_i32, %c0_i32_0 : i32, i32, i32, i32, i32
  }
  func.func @transform_2(%arg0: i32, %arg1: i32) -> (i32, i32) {
    %c0_i32 = arith.constant 0 : i32
    %c0_i32_0 = arith.constant 0 : i32
    %c0_i32_1 = arith.constant 0 : i32
    return %c0_i32, %c0_i32_0 : i32, i32
  }
  func.func @transform_3(%arg0: i32, %arg1: i32) -> (i32, i32) {
    %c0_i32 = arith.constant 0 : i32
    %c0_i32_0 = arith.constant 0 : i32
    %c0_i32_1 = arith.constant 0 : i32
    return %c0_i32, %c0_i32_0 : i32, i32
  }
  func.func @transform_4(%arg0: i32, %arg1: i32) -> (i32, i32, i32) {
    %c0_i32 = arith.constant 0 : i32
    %c0_i32_0 = arith.constant 0 : i32
    return %arg0, %arg1, %c0_i32 : i32, i32, i32
  }
}

</mosaic_0001>

<llo_original>
// kernel: tpu_custom_call.1
$region0: #{tpu_custom_call.1}
  #allocation0 [shape = 'u32[]', space=smem, size = 0x4, offset = 0x4, fixed_abs, tag = 'smem constant byte address 0x4 - core index']
  #allocation1 [shape = 'u32[144,128]{1,0:T(1,128)}', space=vmem, size = 0x12000, scoped, tag = 'internal scratch']
  %s0 = inlined_call_operand.hbm [shape: f32[2,8,2,8,8], index: 0, kind: input, shape index: {}]
  %s1 = inlined_call_operand.hbm [shape: f32[2,8,2,8,8], index: 1, kind: input, shape index: {}]
  %s2 = inlined_call_operand.vmem [shape: bf16[16,8], index: 2, kind: input, shape index: {}]
  %s3 = inlined_call_operand.vmem [shape: f32[1,8], index: 3, kind: input, shape index: {}]
  %s4 = inlined_call_operand.vmem [shape: f32[2,64,8], index: 4, kind: output, shape index: {}]
  %s5 = sld [smem:[#allocation0]]
  $region57: #{tpu_custom_call.1} parent=0
    _
  %s7 = ssub.s32 1, %s5
  %s8 = scalar_select 0, %s7, %s5
  $region1: #{tpu_custom_call.1} parent=0
    #allocation2 [shape = 'u8[65536]{0}', space=vmem, size = 0x10000, scoped, tag = 'input window, operand 0']
    #allocation3 [shape = 's32[2]{0}', space=sflag, size = 0x8, scoped, tag = 'scoped memory for tpu_custom_call.1']
    #allocation4 [shape = 'u8[65536]{0}', space=vmem, size = 0x10000, scoped, tag = 'input window, operand 1']
    #allocation5 [shape = 's32[2]{0}', space=sflag, size = 0x8, scoped, tag = 'scoped memory for tpu_custom_call.1']
    %9 = vsyncpa [#allocation3], 0
    %s10 = scalar_lea.sflag [#allocation3], 1
    %11 = vsyncpa %s10, 0
    %12 = vsyncpa [#allocation5], 0
    %s13 = scalar_lea.sflag [#allocation5], 1
    %14 = vsyncpa %s13, 0
    loop: start=0, step=1, limit=4
    $region2: #{tpu_custom_call.1} parent=1 // loop_pre_header
      _
    $region3: #{tpu_custom_call.1} parent=1 // loop_header
      %s16 = sphi 0, %s20
      %p17 = scmp.ge.s32.totalorder %s16, 4
      %s23 = sphi 0, %s35
      %s24 = sphi 0, %s31
      %s25 = sphi 0, %s23
      %s26 = sphi 0, %s24
      %s27 = sphi 0, %s25
      %s28 = sphi 0, %s26
      %s40 = sphi 0, %s42
      %s43 = sphi 0, %s40
      %s44 = sphi 0, %s43
      %s60 = sphi 0, %s44
      %s68 = sphi 0, %s70
      %s71 = sphi 0, %s68
      %s72 = sphi 0, %s71
      %s88 = sphi 0, %s72
      %s92 = sphi 0, %s92
      %s94 = sphi 0, %s92
      %s95 = sphi 0, %s94
      %s109 = sphi 0, %s95
      %s113 = sphi 0, %s113
      %s115 = sphi 0, %s113
      %s116 = sphi 0, %s115
      %s130 = sphi 0, %s116
      %s138 = sphi 0, %s140
      %s141 = sphi 0, %s138
      %s142 = sphi 0, %s141
      %s158 = sphi 0, %s142
    $region4: #{tpu_custom_call.1} parent=1 // loop_header_branch
      %19 = sbr.rel (%p17) target = $region8
    $region5: #{tpu_custom_call.1} parent=1 // loop_body
      %s21 = ssub.s32 %s16, 1
      %s22 = ssub.s32 %s16, 2
      %s29 = sadd.s32 1, %s24
      %p30 = scmp.ge.s32.totalorder %s29, 1
      %s31 = scalar_select %p30, 0, %s29
      %s32 = sadd.s32 1, %s23
      %s33 = scalar_select %p30, %s32, %s23
      %p34 = scmp.ge.s32.totalorder %s33, 2
      %s35 = scalar_select %p34, 0, %s33
      %s36 = ssub.s32 %s23, %s35
      %s37 = ssub.s32 %s24, %s31
      %s38 = sor.u32 %s36, %s37
      %p39 = scmp.eq.s32.totalorder %s38, 0
      %s41 = sadd.s32 %s40, 1
      %s42 = scalar_select %p39, %s40, %s41
      %p45 = pneg %p39
      %p46 = scmp.eq.s32.totalorder %s16, 1
      %p47 = por %p45, %p46
      %p48 = scmp.ne.s32.totalorder %s40, %s43
      %p49 = scmp.eq.s32.totalorder %s16, 0
      %p50 = por %p48, %p49
      %p51 = scmp.ne.s32.totalorder %s40, %s43
      %p52 = scmp.eq.s32.totalorder %s21, 1
      %p53 = por %p51, %p52
      %p54 = scmp.ne.s32.totalorder %s43, %s44
      %p55 = scmp.eq.s32.totalorder %s21, 0
      %p56 = por %p54, %p55
      %p57 = scmp.ne.s32.totalorder %s43, %s44
      %p58 = scmp.eq.s32.totalorder %s22, 1
      %p59 = por %p57, %p58
      %p61 = scmp.ne.s32.totalorder %s44, %s60
      %p62 = scmp.eq.s32.totalorder %s22, 0
      %p63 = por %p61, %p62
      %s64 = ssub.s32 %s23, %s35
      %s65 = ssub.s32 %s24, %s31
      %s66 = sor.u32 %s64, %s65
      %p67 = scmp.eq.s32.totalorder %s66, 0
      %s69 = sadd.s32 %s68, 1
      %s70 = scalar_select %p67, %s68, %s69
      %p73 = pneg %p67
      %p74 = scmp.eq.s32.totalorder %s16, 1
      %p75 = por %p73, %p74
      %p76 = scmp.ne.s32.totalorder %s68, %s71
      %p77 = scmp.eq.s32.totalorder %s16, 0
      %p78 = por %p76, %p77
      %p79 = scmp.ne.s32.totalorder %s68, %s71
      %p80 = scmp.eq.s32.totalorder %s21, 1
      %p81 = por %p79, %p80
      %p82 = scmp.ne.s32.totalorder %s71, %s72
      %p83 = scmp.eq.s32.totalorder %s21, 0
      %p84 = por %p82, %p83
      %p85 = scmp.ne.s32.totalorder %s71, %s72
      %p86 = scmp.eq.s32.totalorder %s22, 1
      %p87 = por %p85, %p86
      %p89 = scmp.ne.s32.totalorder %s72, %s88
      %p90 = scmp.eq.s32.totalorder %s22, 0
      %p91 = por %p89, %p90
      %s93 = sadd.s32 %s92, 1
      %p96 = scmp.eq.s32.totalorder %s16, 1
      %p97 = scmp.ne.s32.totalorder %s92, %s94
      %p98 = scmp.eq.s32.totalorder %s16, 0
      %p99 = por %p97, %p98
      %p100 = scmp.ne.s32.totalorder %s92, %s94
      %p101 = scmp.eq.s32.totalorder %s21, 1
      %p102 = por %p100, %p101
      %p103 = scmp.ne.s32.totalorder %s94, %s95
      %p104 = scmp.eq.s32.totalorder %s21, 0
      %p105 = por %p103, %p104
      %p106 = scmp.ne.s32.totalorder %s94, %s95
      %p107 = scmp.eq.s32.totalorder %s22, 1
      %p108 = por %p106, %p107
      %p110 = scmp.ne.s32.totalorder %s95, %s109
      %p111 = scmp.eq.s32.totalorder %s22, 0
      %p112 = por %p110, %p111
      %s114 = sadd.s32 %s113, 1
      %p117 = scmp.eq.s32.totalorder %s16, 1
      %p118 = scmp.ne.s32.totalorder %s113, %s115
      %p119 = scmp.eq.s32.totalorder %s16, 0
      %p120 = por %p118, %p119
      %p121 = scmp.ne.s32.totalorder %s113, %s115
      %p122 = scmp.eq.s32.totalorder %s21, 1
      %p123 = por %p121, %p122
      %p124 = scmp.ne.s32.totalorder %s115, %s116
      %p125 = scmp.eq.s32.totalorder %s21, 0
      %p126 = por %p124, %p125
      %p127 = scmp.ne.s32.totalorder %s115, %s116
      %p128 = scmp.eq.s32.totalorder %s22, 1
      %p129 = por %p127, %p128
      %p131 = scmp.ne.s32.totalorder %s116, %s130
      %p132 = scmp.eq.s32.totalorder %s22, 0
      %p133 = por %p131, %p132
      %s134 = ssub.s32 %s23, %s35
      %s135 = ssub.s32 %s24, %s31
      %s136 = sor.u32 %s134, %s135
      %p137 = scmp.eq.s32.totalorder %s136, 0
      %s139 = sadd.s32 %s138, 1
      %s140 = scalar_select %p137, %s138, %s139
      %p143 = pneg %p137
      %p144 = scmp.eq.s32.totalorder %s16, 1
      %p145 = por %p143, %p144
      %p146 = scmp.ne.s32.totalorder %s138, %s141
      %p147 = scmp.eq.s32.totalorder %s16, 0
      %p148 = por %p146, %p147
      %p149 = scmp.ne.s32.totalorder %s138, %s141
      %p150 = scmp.eq.s32.totalorder %s21, 1
      %p151 = por %p149, %p150
      %p152 = scmp.ne.s32.totalorder %s141, %s142
      %p153 = scmp.eq.s32.totalorder %s21, 0
      %p154 = por %p152, %p153
      %p155 = scmp.ne.s32.totalorder %s141, %s142
      %p156 = scmp.eq.s32.totalorder %s22, 1
      %p157 = por %p155, %p156
      %p159 = scmp.ne.s32.totalorder %s142, %s158
      %p160 = scmp.eq.s32.totalorder %s22, 0
      %p161 = por %p159, %p160
      %p162 = scmp.le.s32.totalorder 1, %s16
      %p163 = scmp.lt.s32.totalorder %s16, 3
      %p164 = pnand %p162, %p163
      %p165 = pneg %p164
      // Predicated region
      $region9: #{tpu_custom_call.1} parent=5 // pred_check
        _
      $region10: #{tpu_custom_call.1} parent=5 // pred_check_branch
        %167 = sbr.rel (%p164) target = $region12
      $region11: #{tpu_custom_call.1} parent=5 // pred_region
        %s168 = ssub.s32 %s16, 1
        // Predicated region
        $region13: #{tpu_custom_call.1} parent=11 // pred_check
          %p169 = pneg %p105
        $region14: #{tpu_custom_call.1} parent=11 // pred_check_branch
          %171 = sbr.rel (%p169) target = $region16
        $region15: #{tpu_custom_call.1} parent=11 // pred_region
          _
        $region16: #{tpu_custom_call.1} parent=11 // pred_fallthru
          _
        // Predicated region
        $region17: #{tpu_custom_call.1} parent=11 // pred_check
          %p172 = pneg %p126
        $region18: #{tpu_custom_call.1} parent=11 // pred_check_branch
          %174 = sbr.rel (%p172) target = $region20
        $region19: #{tpu_custom_call.1} parent=11 // pred_region
          _
        $region20: #{tpu_custom_call.1} parent=11 // pred_fallthru
          _
      $region12: #{tpu_custom_call.1} parent=5 // pred_fallthru
        _
      %p175 = scmp.lt.s32.totalorder %s16, 2
      // Predicated region
      $region21: #{tpu_custom_call.1} parent=5 // pred_check
        %p176 = pneg %p175
      $region22: #{tpu_custom_call.1} parent=5 // pred_check_branch
        %178 = sbr.rel (%p176) target = $region24
      $region23: #{tpu_custom_call.1} parent=5 // pred_region
        // Predicated region
        $region25: #{tpu_custom_call.1} parent=23 // pred_check
          %p179 = pneg %p50
        $region26: #{tpu_custom_call.1} parent=23 // pred_check_branch
          %181 = sbr.rel (%p179) target = $region28
        $region27: #{tpu_custom_call.1} parent=23 // pred_region
          %s182 = sand.u32 %s40, 1
          %s183 = scalar_lea.sflag [#allocation3], %s182
          %s184 = sand.u32 %s40, 1
          %s185 = smul.addr %s184, 64
          %s186 = scalar_lea.vmem [#allocation2], %s185
          %s187 = smul.u32 8, %s24
          %s189 = ssub.s32 1024, 1024
          %190 = vsyncadd %s183, %s189
          %s191 = smul.addr %s187, 2
          %s192 = smul.addr %s23, 16
          %s193 = sadd.s32 %s191, %s192
          %s194 = smul.addr %s193, 128
          %s195 = scalar_lea.hbm %s0, %s194
          %s196 = sshll.u32 %s186, 4
          %s197 = int_to_ptr.vmem [resolvable:$true] %s196
          %202 = dma.hbm_to_vmem [thread:$0]  %s195, 1024, %s197, %s183, 256, 128, 8
        $region28: #{tpu_custom_call.1} parent=23 // pred_fallthru
          _
        // Predicated region
        $region29: #{tpu_custom_call.1} parent=23 // pred_check
          %p203 = pneg %p78
        $region30: #{tpu_custom_call.1} parent=23 // pred_check_branch
          %205 = sbr.rel (%p203) target = $region32
        $region31: #{tpu_custom_call.1} parent=23 // pred_region
          %s206 = sand.u32 %s68, 1
          %s207 = scalar_lea.sflag [#allocation5], %s206
          %s208 = sand.u32 %s68, 1
          %s209 = smul.addr %s208, 64
          %s210 = scalar_lea.vmem [#allocation4], %s209
          %s211 = smul.u32 8, %s24
          %s213 = ssub.s32 1024, 1024
          %214 = vsyncadd %s207, %s213
          %s215 = smul.addr %s211, 2
          %s216 = sadd.s32 1, %s215
          %s217 = smul.addr %s23, 16
          %s218 = sadd.s32 %s216, %s217
          %s219 = smul.addr %s218, 128
          %s220 = scalar_lea.hbm %s1, %s219
          %s221 = sshll.u32 %s210, 4
          %s222 = int_to_ptr.vmem [resolvable:$true] %s221
          %227 = dma.hbm_to_vmem [thread:$0]  %s220, 1024, %s222, %s207, 256, 128, 8
        $region32: #{tpu_custom_call.1} parent=23 // pred_fallthru
          _
      $region24: #{tpu_custom_call.1} parent=5 // pred_fallthru
        _
      %p228 = scmp.le.s32.totalorder 1, %s16
      %p229 = scmp.lt.s32.totalorder %s16, 3
      %p230 = pnand %p228, %p229
      %p231 = pneg %p230
      // Predicated region
      $region33: #{tpu_custom_call.1} parent=5 // pred_check
        _
      $region34: #{tpu_custom_call.1} parent=5 // pred_check_branch
        %233 = sbr.rel (%p230) target = $region36
      $region35: #{tpu_custom_call.1} parent=5 // pred_region
        %s234 = ssub.s32 %s16, 1
        %s235 = sand.u32 %s43, 1
        %s236 = scalar_lea.sflag [#allocation3], %s235
        %s237 = sand.u32 %s43, 1
        %s238 = smul.addr %s237, 64
        %s239 = scalar_lea.vmem [#allocation2], %s238
        // Predicated region
        $region37: #{tpu_custom_call.1} parent=35 // pred_check
          %p240 = pneg %p56
        $region38: #{tpu_custom_call.1} parent=35 // pred_check_branch
          %242 = sbr.rel (%p240) target = $region40
        $region39: #{tpu_custom_call.1} parent=35 // pred_region
          %243 = dma.done %s236, 1024
        $region40: #{tpu_custom_call.1} parent=35 // pred_fallthru
          _
        %s244 = sand.u32 %s71, 1
        %s245 = scalar_lea.sflag [#allocation5], %s244
        %s246 = sand.u32 %s71, 1
        %s247 = smul.addr %s246, 64
        %s248 = scalar_lea.vmem [#allocation4], %s247
        // Predicated region
        $region41: #{tpu_custom_call.1} parent=35 // pred_check
          %p249 = pneg %p84
        $region42: #{tpu_custom_call.1} parent=35 // pred_check_branch
          %251 = sbr.rel (%p249) target = $region44
        $region43: #{tpu_custom_call.1} parent=35 // pred_region
          %252 = dma.done %s245, 1024
        $region44: #{tpu_custom_call.1} parent=35 // pred_fallthru
          _
        %s253 = sand.u32 %s43, 1
        %s254 = scalar_lea.sflag [#allocation3], %s253
        %s255 = sand.u32 %s43, 1
        %s256 = smul.addr %s255, 64
        %s257 = scalar_lea.vmem [#allocation2], %s256
        %p258 = pneg %p56
        %p259 = pneg %p53
        %s260 = sand.u32 %s71, 1
        %s261 = scalar_lea.sflag [#allocation5], %s260
        %s262 = sand.u32 %s71, 1
        %s263 = smul.addr %s262, 64
        %s264 = scalar_lea.vmem [#allocation4], %s263
        %p265 = pneg %p84
        %p266 = pneg %p81
        %p267 = pneg %p105
        %p268 = pneg %p102
        %p269 = pneg %p126
        %p270 = pneg %p123
        %p271 = pneg %p154
        %p272 = pneg %p151
        %s273 = smul.u32 8, %s26
        %p274 = scmp.lt.s32.totalorder %s25, 1
        %s275 = scalar_select %p274, %s25, 1
        %p276 = scmp.lt.s32.totalorder %s273, 7
        %s277 = scalar_select %p276, %s273, 7
        %s278 = smul.addr %s275, 8
        %s279 = sadd.s32 %s277, %s278
        %s280 = smul.addr %s279, 8
        %s281 = scalar_lea.vmem %s4, %s280
        %s282 = smul.u32 8, %s26
        %s283 = smul.u32 8, %s26
        %s284 = smul.u32 8, %s26
        %p285 = scmp.lt.s32.totalorder %s25, 1
        %s286 = scalar_select %p285, %s25, 1
        %p287 = scmp.lt.s32.totalorder %s284, 7
        %s288 = scalar_select %p287, %s284, 7
        %s289 = smul.addr %s286, 8
        %s290 = sadd.s32 %s288, %s289
        %s291 = smul.addr %s290, 8
        %s292 = scalar_lea.vmem %s4, %s291
        %s293 = smul.u32 8, %s26
        %v295 = vld [vmem:[%s239] sm:$0xff]
        %v296 = vld [vmem:[%s239 + $0x8] sm:$0xff]
        %v297 = vld [vmem:[%s239 + $0x10] sm:$0xff]
        %v298 = vld [vmem:[%s239 + $0x18] sm:$0xff]
        %v299 = vld [vmem:[%s239 + $0x20] sm:$0xff]
        %v300 = vld [vmem:[%s239 + $0x28] sm:$0xff]
        %v301 = vld [vmem:[%s239 + $0x30] sm:$0xff]
        %v302 = vld [vmem:[%s239 + $0x38] sm:$0xff]
        %v303 = vld [vmem:[%s248] sm:$0xff]
        %v304 = vld [vmem:[%s248 + $0x8] sm:$0xff]
        %v305 = vld [vmem:[%s248 + $0x10] sm:$0xff]
        %v306 = vld [vmem:[%s248 + $0x18] sm:$0xff]
        %v307 = vld [vmem:[%s248 + $0x20] sm:$0xff]
        %v308 = vld [vmem:[%s248 + $0x28] sm:$0xff]
        %v309 = vld [vmem:[%s248 + $0x30] sm:$0xff]
        %v310 = vld [vmem:[%s248 + $0x38] sm:$0xff]
        %vm311 = vcmask 64512
        %v312 = vsel %vm311, %v295, 0.0
        %313 = vadd.xlane.f32.xlu0 %v312
        %v314 = vpop.xlane.xlu0 %313
        %v315 = vsel %vm311, %v296, 0.0
        %316 = vadd.xlane.f32.xlu0 %v315
        %v317 = vpop.xlane.xlu0 %316
        %v318 = vsel %vm311, %v297, 0.0
        %319 = vadd.xlane.f32.xlu0 %v318
        %v320 = vpop.xlane.xlu0 %319
        %v321 = vsel %vm311, %v298, 0.0
        %322 = vadd.xlane.f32.xlu0 %v321
        %v323 = vpop.xlane.xlu0 %322
        %v324 = vsel %vm311, %v299, 0.0
        %325 = vadd.xlane.f32.xlu0 %v324
        %v326 = vpop.xlane.xlu0 %325
        %v327 = vsel %vm311, %v300, 0.0
        %328 = vadd.xlane.f32.xlu0 %v327
        %v329 = vpop.xlane.xlu0 %328
        %v330 = vsel %vm311, %v301, 0.0
        %331 = vadd.xlane.f32.xlu0 %v330
        %v332 = vpop.xlane.xlu0 %331
        %v333 = vsel %vm311, %v302, 0.0
        %334 = vadd.xlane.f32.xlu0 %v333
        %v335 = vpop.xlane.xlu0 %334
        %v336 = vsel %vm311, %v303, 0.0
        %337 = vadd.xlane.f32.xlu0 %v336
        %v338 = vpop.xlane.xlu0 %337
        %v339 = vsel %vm311, %v304, 0.0
        %340 = vadd.xlane.f32.xlu0 %v339
        %v341 = vpop.xlane.xlu0 %340
        %v342 = vsel %vm311, %v305, 0.0
        %343 = vadd.xlane.f32.xlu0 %v342
        %v344 = vpop.xlane.xlu0 %343
        %v345 = vsel %vm311, %v306, 0.0
        %346 = vadd.xlane.f32.xlu0 %v345
        %v347 = vpop.xlane.xlu0 %346
        %v348 = vsel %vm311, %v307, 0.0
        %349 = vadd.xlane.f32.xlu0 %v348
        %v350 = vpop.xlane.xlu0 %349
        %v351 = vsel %vm311, %v308, 0.0
        %352 = vadd.xlane.f32.xlu0 %v351
        %v353 = vpop.xlane.xlu0 %352
        %v354 = vsel %vm311, %v309, 0.0
        %355 = vadd.xlane.f32.xlu0 %v354
        %v356 = vpop.xlane.xlu0 %355
        %v357 = vsel %vm311, %v310, 0.0
        %358 = vadd.xlane.f32.xlu0 %v357
        %v359 = vpop.xlane.xlu0 %358
        %v360 = vadd.f32 %v314, %v338
        %v361 = vadd.f32 %v317, %v341
        %v362 = vadd.f32 %v320, %v344
        %v363 = vadd.f32 %v323, %v347
        %v364 = vadd.f32 %v326, %v350
        %v365 = vadd.f32 %v329, %v353
        %v366 = vadd.f32 %v332, %v356
        %v367 = vadd.f32 %v335, %v359
        %v368 = vmul.f32 %v295, %v295
        %v369 = vmul.f32 %v296, %v296
        %v370 = vmul.f32 %v297, %v297
        %v371 = vmul.f32 %v298, %v298
        %v372 = vmul.f32 %v299, %v299
        %v373 = vmul.f32 %v300, %v300
        %v374 = vmul.f32 %v301, %v301
        %v375 = vmul.f32 %v302, %v302
        %v376 = vsel %vm311, %v368, 0.0
        %377 = vadd.xlane.f32.xlu0 %v376
        %v378 = vpop.xlane.xlu0 %377
        %v379 = vsel %vm311, %v369, 0.0
        %380 = vadd.xlane.f32.xlu0 %v379
        %v381 = vpop.xlane.xlu0 %380
        %v382 = vsel %vm311, %v370, 0.0
        %383 = vadd.xlane.f32.xlu0 %v382
        %v384 = vpop.xlane.xlu0 %383
        %v385 = vsel %vm311, %v371, 0.0
        %386 = vadd.xlane.f32.xlu0 %v385
        %v387 = vpop.xlane.xlu0 %386
        %v388 = vsel %vm311, %v372, 0.0
        %389 = vadd.xlane.f32.xlu0 %v388
        %v390 = vpop.xlane.xlu0 %389
        %v391 = vsel %vm311, %v373, 0.0
        %392 = vadd.xlane.f32.xlu0 %v391
        %v393 = vpop.xlane.xlu0 %392
        %v394 = vsel %vm311, %v374, 0.0
        %395 = vadd.xlane.f32.xlu0 %v394
        %v396 = vpop.xlane.xlu0 %395
        %v397 = vsel %vm311, %v375, 0.0
        %398 = vadd.xlane.f32.xlu0 %v397
        %v399 = vpop.xlane.xlu0 %398
        %v400 = vmul.f32 %v303, %v303
        %v401 = vmul.f32 %v304, %v304
        %v402 = vmul.f32 %v305, %v305
        %v403 = vmul.f32 %v306, %v306
        %v404 = vmul.f32 %v307, %v307
        %v405 = vmul.f32 %v308, %v308
        %v406 = vmul.f32 %v309, %v309
        %v407 = vmul.f32 %v310, %v310
        %v408 = vsel %vm311, %v400, 0.0
        %409 = vadd.xlane.f32.xlu0 %v408
        %v410 = vpop.xlane.xlu0 %409
        %v411 = vsel %vm311, %v401, 0.0
        %412 = vadd.xlane.f32.xlu0 %v411
        %v413 = vpop.xlane.xlu0 %412
        %v414 = vsel %vm311, %v402, 0.0
        %415 = vadd.xlane.f32.xlu0 %v414
        %v416 = vpop.xlane.xlu0 %415
        %v417 = vsel %vm311, %v403, 0.0
        %418 = vadd.xlane.f32.xlu0 %v417
        %v419 = vpop.xlane.xlu0 %418
        %v420 = vsel %vm311, %v404, 0.0
        %421 = vadd.xlane.f32.xlu0 %v420
        %v422 = vpop.xlane.xlu0 %421
        %v423 = vsel %vm311, %v405, 0.0
        %424 = vadd.xlane.f32.xlu0 %v423
        %v425 = vpop.xlane.xlu0 %424
        %v426 = vsel %vm311, %v406, 0.0
        %427 = vadd.xlane.f32.xlu0 %v426
        %v428 = vpop.xlane.xlu0 %427
        %v429 = vsel %vm311, %v407, 0.0
        %430 = vadd.xlane.f32.xlu0 %v429
        %v431 = vpop.xlane.xlu0 %430
        %v432 = vadd.f32 %v378, %v410
        %v433 = vadd.f32 %v381, %v413
        %v434 = vadd.f32 %v384, %v416
        %v435 = vadd.f32 %v387, %v419
        %v436 = vadd.f32 %v390, %v422
        %v437 = vadd.f32 %v393, %v425
        %v438 = vadd.f32 %v396, %v428
        %v439 = vadd.f32 %v399, %v431
        %v440 = vmul.f32 %v360, 0.0625
        %v441 = vmul.f32 %v361, 0.0625
        %v442 = vmul.f32 %v362, 0.0625
        %v443 = vmul.f32 %v363, 0.0625
        %v444 = vmul.f32 %v364, 0.0625
        %v445 = vmul.f32 %v365, 0.0625
        %v446 = vmul.f32 %v366, 0.0625
        %v447 = vmul.f32 %v367, 0.0625
        %v448 = vmul.f32 %v432, 0.0625
        %v449 = vmul.f32 %v433, 0.0625
        %v450 = vmul.f32 %v434, 0.0625
        %v451 = vmul.f32 %v435, 0.0625
        %v452 = vmul.f32 %v436, 0.0625
        %v453 = vmul.f32 %v437, 0.0625
        %v454 = vmul.f32 %v438, 0.0625
        %v455 = vmul.f32 %v439, 0.0625
        %v456 = vmul.f32 %v440, %v440
        %v457 = vmul.f32 %v441, %v441
        %v458 = vmul.f32 %v442, %v442
        %v459 = vmul.f32 %v443, %v443
        %v460 = vmul.f32 %v444, %v444
        %v461 = vmul.f32 %v445, %v445
        %v462 = vmul.f32 %v446, %v446
        %v463 = vmul.f32 %v447, %v447
        %v464 = vsub.f32 %v448, %v456
        %v465 = vsub.f32 %v449, %v457
        %v466 = vsub.f32 %v450, %v458
        %v467 = vsub.f32 %v451, %v459
        %v468 = vsub.f32 %v452, %v460
        %v469 = vsub.f32 %v453, %v461
        %v470 = vsub.f32 %v454, %v462
        %v471 = vsub.f32 %v455, %v463
        %v472 = vadd.f32 %v464, 1e-05
        %v473 = vadd.f32 %v465, 1e-05
        %v474 = vadd.f32 %v466, 1e-05
        %v475 = vadd.f32 %v467, 1e-05
        %v476 = vadd.f32 %v468, 1e-05
        %v477 = vadd.f32 %v469, 1e-05
        %v478 = vadd.f32 %v470, 1e-05
        %v479 = vadd.f32 %v471, 1e-05
        %v480 = vrsqrt.pop %v472
        %v481 = vrsqrt.pop %v473
        %v482 = vrsqrt.pop %v474
        %v483 = vrsqrt.pop %v475
        %v484 = vrsqrt.pop %v476
        %v485 = vrsqrt.pop %v477
        %v486 = vrsqrt.pop %v478
        %v487 = vrsqrt.pop %v479
        %v488 = vsub.f32 %v295, %v440
        %v489 = vsub.f32 %v296, %v441
        %v490 = vsub.f32 %v297, %v442
        %v491 = vsub.f32 %v298, %v443
        %v492 = vsub.f32 %v299, %v444
        %v493 = vsub.f32 %v300, %v445
        %v494 = vsub.f32 %v301, %v446
        %v495 = vsub.f32 %v302, %v447
        %v496 = vmul.f32 %v488, %v480
        %v497 = vmul.f32 %v489, %v481
        %v498 = vmul.f32 %v490, %v482
        %v499 = vmul.f32 %v491, %v483
        %v500 = vmul.f32 %v492, %v484
        %v501 = vmul.f32 %v493, %v485
        %v502 = vmul.f32 %v494, %v486
        %v503 = vmul.f32 %v495, %v487
        %v504 = vpack.c.bf16 %v497, %v496
        %v505 = vpack.c.bf16 %v499, %v498
        %v506 = vpack.c.bf16 %v501, %v500
        %v507 = vpack.c.bf16 %v503, %v502
        %v508 = vsub.f32 %v303, %v440
        %v509 = vsub.f32 %v304, %v441
        %v510 = vsub.f32 %v305, %v442
        %v511 = vsub.f32 %v306, %v443
        %v512 = vsub.f32 %v307, %v444
        %v513 = vsub.f32 %v308, %v445
        %v514 = vsub.f32 %v309, %v446
        %v515 = vsub.f32 %v310, %v447
        %v516 = vmul.f32 %v508, %v480
        %v517 = vmul.f32 %v509, %v481
        %v518 = vmul.f32 %v510, %v482
        %v519 = vmul.f32 %v511, %v483
        %v520 = vmul.f32 %v512, %v484
        %v521 = vmul.f32 %v513, %v485
        %v522 = vmul.f32 %v514, %v486
        %v523 = vmul.f32 %v515, %v487
        %v524 = vpack.c.bf16 %v517, %v516
        %v525 = vpack.c.bf16 %v519, %v518
        %v526 = vpack.c.bf16 %v521, %v520
        %v527 = vpack.c.bf16 %v523, %v522
        %v528 = vld [vmem:[%s2] sm:$0xf]
        %v529 = vld [vmem:[%s2 + $0x4] sm:$0xf]
        %v531 = vsel %vm311, %v524, 0
        %v534 = vsel %vm311, %v525, 0
        %v537 = vsel %vm311, %v526, 0
        %v540 = vsel %vm311, %v527, 0
        %vm542 = vcmask 1043456
        %v544 = vsel %vm542, %v529, 0
        %546 = vmatprep.subr.bf16.mxu0 0
        %547 = vmatpush1.bf16.msra.mxu0 0
        %548 = vmatprep.subr.bf16.mxu0 0
        %549 = vmatpush1.bf16.msra.mxu0 0
        %550 = vmatprep.subr.bf16.mxu0 0
        %551 = vmatpush1.bf16.msra.mxu0 0
        %552 = vmatprep.subr.bf16.mxu0 0
        %553 = vmatpush1.bf16.msra.mxu0 0
        %554 = vmatprep.subr.bf16.mxu0 0
        %555 = vmatpush1.bf16.msra.mxu0 0
        %556 = vmatprep.subr.bf16.mxu0 0
        %557 = vmatpush1.bf16.msra.mxu0 0
        %558 = vmatprep.subr.bf16.mxu0 0
        %559 = vmatpush1.bf16.msra.mxu0 0
        %560 = vmatprep.subr.bf16.mxu0 0
        %561 = vmatpush1.bf16.msra.mxu0 %v544
        %562 = vmatprep.subr.bf16.mxu0 0
        %563 = vmatpush2.bf16.msra.mxu0 0
        %564 = vmatprep.subr.bf16.mxu0 0
        %565 = vmatpush2.bf16.msra.mxu0 0
        %566 = vmatprep.subr.bf16.mxu0 0
        %567 = vmatpush2.bf16.msra.mxu0 0
        %568 = vmatprep.subr.bf16.mxu0 0
        %569 = vmatpush2.bf16.msra.mxu0 0
        %570 = vmatprep.subr.bf16.mxu0 0
        %571 = vmatpush2.bf16.msra.mxu0 0
        %572 = vmatprep.subr.bf16.mxu0 0
        %573 = vmatpush2.bf16.msra.mxu0 0
        %574 = vmatprep.subr.bf16.mxu0 0
        %575 = vmatpush2.bf16.msra.mxu0 0
        %576 = vmatprep.subr.bf16.mxu0 0
        %577 = vmatpush2.bf16.msra.mxu0 0
        %578 = vmatprep.mubr.bf16.mxu0 0
        %579 = vmatmul.mubr.bf16.gmra.mxu0 %v531
        %v580 = vpop.f32.mrf.mxu0
        %v581 = vadd.f32 0.0, %v580
        %v582 = vpop.f32.mrf.mxu0
        %v583 = vpop.f32.mrf.mxu0
        %v584 = vadd.f32 0.0, %v583
        %v585 = vpop.f32.mrf.mxu0
        %586 = vmatprep.mubr.bf16.mxu0 0
        %587 = vmatmul.mubr.bf16.gmra.mxu0 %v534
        %v588 = vpop.f32.mrf.mxu0
        %v589 = vadd.f32 0.0, %v588
        %v590 = vpop.f32.mrf.mxu0
        %v591 = vpop.f32.mrf.mxu0
        %v592 = vadd.f32 0.0, %v591
        %v593 = vpop.f32.mrf.mxu0
        %594 = vmatprep.mubr.bf16.mxu0 0
        %595 = vmatmul.mubr.bf16.gmra.mxu0 %v537
        %v596 = vpop.f32.mrf.mxu0
        %v597 = vadd.f32 0.0, %v596
        %v598 = vpop.f32.mrf.mxu0
        %v599 = vpop.f32.mrf.mxu0
        %v600 = vadd.f32 0.0, %v599
        %v601 = vpop.f32.mrf.mxu0
        %602 = vmatprep.mubr.bf16.mxu0 0
        %603 = vmatmul.mubr.bf16.gmra.mxu0 %v540
        %v604 = vpop.f32.mrf.mxu0
        %v605 = vadd.f32 0.0, %v604
        %v606 = vpop.f32.mrf.mxu0
        %v607 = vpop.f32.mrf.mxu0
        %v608 = vadd.f32 0.0, %v607
        %v609 = vpop.f32.mrf.mxu0
        %610 = vdwg.mxu0
        %v612 = vsel %vm311, %v504, 0
        %v615 = vsel %vm311, %v505, 0
        %v618 = vsel %vm311, %v506, 0
        %v621 = vsel %vm311, %v507, 0
        %v624 = vsel %vm542, %v528, 0
        %626 = vmatprep.subr.bf16.mxu0 0
        %627 = vmatpush1.bf16.msra.mxu0 0
        %628 = vmatprep.subr.bf16.mxu0 0
        %629 = vmatpush1.bf16.msra.mxu0 0
        %630 = vmatprep.subr.bf16.mxu0 0
        %631 = vmatpush1.bf16.msra.mxu0 0
        %632 = vmatprep.subr.bf16.mxu0 0
        %633 = vmatpush1.bf16.msra.mxu0 0
        %634 = vmatprep.subr.bf16.mxu0 0
        %635 = vmatpush1.bf16.msra.mxu0 0
        %636 = vmatprep.subr.bf16.mxu0 0
        %637 = vmatpush1.bf16.msra.mxu0 0
        %638 = vmatprep.subr.bf16.mxu0 0
        %639 = vmatpush1.bf16.msra.mxu0 0
        %640 = vmatprep.subr.bf16.mxu0 0
        %641 = vmatpush1.bf16.msra.mxu0 %v624
        %642 = vmatprep.subr.bf16.mxu0 0
        %643 = vmatpush2.bf16.msra.mxu0 0
        %644 = vmatprep.subr.bf16.mxu0 0
        %645 = vmatpush2.bf16.msra.mxu0 0
        %646 = vmatprep.subr.bf16.mxu0 0
        %647 = vmatpush2.bf16.msra.mxu0 0
        %648 = vmatprep.subr.bf16.mxu0 0
        %649 = vmatpush2.bf16.msra.mxu0 0
        %650 = vmatprep.subr.bf16.mxu0 0
        %651 = vmatpush2.bf16.msra.mxu0 0
        %652 = vmatprep.subr.bf16.mxu0 0
        %653 = vmatpush2.bf16.msra.mxu0 0
        %654 = vmatprep.subr.bf16.mxu0 0
        %655 = vmatpush2.bf16.msra.mxu0 0
        %656 = vmatprep.subr.bf16.mxu0 0
        %657 = vmatpush2.bf16.msra.mxu0 0
        %658 = vmatprep.mubr.bf16.mxu0 0
        %659 = vmatmul.mubr.bf16.gmra.mxu0 %v612
        %v660 = vpop.f32.mrf.mxu0
        %v661 = vadd.f32 %v581, %v660
        %v662 = vpop.f32.mrf.mxu0
        %v663 = vpop.f32.mrf.mxu0
        %v664 = vadd.f32 %v584, %v663
        %v665 = vpop.f32.mrf.mxu0
        %666 = vmatprep.mubr.bf16.mxu0 0
        %667 = vmatmul.mubr.bf16.gmra.mxu0 %v615
        %v668 = vpop.f32.mrf.mxu0
        %v669 = vadd.f32 %v589, %v668
        %v670 = vpop.f32.mrf.mxu0
        %v671 = vpop.f32.mrf.mxu0
        %v672 = vadd.f32 %v592, %v671
        %v673 = vpop.f32.mrf.mxu0
        %674 = vmatprep.mubr.bf16.mxu0 0
        %675 = vmatmul.mubr.bf16.gmra.mxu0 %v618
        %v676 = vpop.f32.mrf.mxu0
        %v677 = vadd.f32 %v597, %v676
        %v678 = vpop.f32.mrf.mxu0
        %v679 = vpop.f32.mrf.mxu0
        %v680 = vadd.f32 %v600, %v679
        %v681 = vpop.f32.mrf.mxu0
        %682 = vmatprep.mubr.bf16.mxu0 0
        %683 = vmatmul.mubr.bf16.gmra.mxu0 %v621
        %v684 = vpop.f32.mrf.mxu0
        %v685 = vadd.f32 %v605, %v684
        %v686 = vpop.f32.mrf.mxu0
        %v687 = vpop.f32.mrf.mxu0
        %v688 = vadd.f32 %v608, %v687
        %v689 = vpop.f32.mrf.mxu0
        %690 = vdwg.mxu0
        %v691 = vld [vmem:[%s3] sm:$0x1]
        %v693 = vlaneseq
        %v694 = vshrl.u32 %v693, 7
        %v695 = vsub.s32 0, %v694
        %v696 = vrot.slane %v691, %v695
        %v698 = vadd.f32 %v661, %v696
        %v699 = vadd.f32 %v664, %v696
        %v700 = vadd.f32 %v669, %v696
        %v701 = vadd.f32 %v672, %v696
        %v702 = vadd.f32 %v677, %v696
        %v703 = vadd.f32 %v680, %v696
        %v704 = vadd.f32 %v685, %v696
        %v705 = vadd.f32 %v688, %v696
        %706 = vst.msk [vmem:[%s292] sm:$0xff] %vm311, %v698
        %707 = vst.msk [vmem:[%s292 + $0x8] sm:$0xff] %vm311, %v699
        %708 = vst.msk [vmem:[%s292 + $0x10] sm:$0xff] %vm311, %v700
        %709 = vst.msk [vmem:[%s292 + $0x18] sm:$0xff] %vm311, %v701
        %710 = vst.msk [vmem:[%s292 + $0x20] sm:$0xff] %vm311, %v702
        %711 = vst.msk [vmem:[%s292 + $0x28] sm:$0xff] %vm311, %v703
        %712 = vst.msk [vmem:[%s292 + $0x30] sm:$0xff] %vm311, %v704
        %713 = vst.msk [vmem:[%s292 + $0x38] sm:$0xff] %vm311, %v705
        %s714 = smul.u32 8, %s26
        %p715 = scmp.lt.s32.totalorder %s25, 1
        %s716 = scalar_select %p715, %s25, 1
        %p717 = scmp.lt.s32.totalorder %s714, 7
        %s718 = scalar_select %p717, %s714, 7
        %s719 = smul.addr %s716, 8
        %s720 = sadd.s32 %s718, %s719
        %s721 = smul.addr %s720, 8
        %s722 = scalar_lea.vmem %s4, %s721
        // Predicated region
        $region45: #{tpu_custom_call.1} parent=35 // pred_check
          %p723 = pneg %p151
        $region46: #{tpu_custom_call.1} parent=35 // pred_check_branch
          %725 = sbr.rel (%p723) target = $region48
        $region47: #{tpu_custom_call.1} parent=35 // pred_region
          %s726 = smul.u32 8, %s26
        $region48: #{tpu_custom_call.1} parent=35 // pred_fallthru
          _
      $region36: #{tpu_custom_call.1} parent=5 // pred_fallthru
        _
      %p727 = scmp.le.s32.totalorder 2, %s16
      // Predicated region
      $region49: #{tpu_custom_call.1} parent=5 // pred_check
        %p728 = pneg %p727
      $region50: #{tpu_custom_call.1} parent=5 // pred_check_branch
        %730 = sbr.rel (%p728) target = $region52
      $region51: #{tpu_custom_call.1} parent=5 // pred_region
        %s731 = ssub.s32 %s16, 2
        // Predicated region
        $region53: #{tpu_custom_call.1} parent=51 // pred_check
          %p732 = pneg %p157
        $region54: #{tpu_custom_call.1} parent=51 // pred_check_branch
          %734 = sbr.rel (%p732) target = $region56
        $region55: #{tpu_custom_call.1} parent=51 // pred_region
          %s735 = smul.u32 8, %s28
          %p736 = scmp.lt.s32.totalorder %s27, 1
          %s737 = scalar_select %p736, %s27, 1
          %p738 = scmp.lt.s32.totalorder %s735, 7
          %s739 = scalar_select %p738, %s735, 7
          %s740 = smul.addr %s737, 8
          %s741 = sadd.s32 %s739, %s740
          %s742 = smul.addr %s741, 8
          %s743 = scalar_lea.vmem %s4, %s742
        $region56: #{tpu_custom_call.1} parent=51 // pred_fallthru
          _
      $region52: #{tpu_custom_call.1} parent=5 // pred_fallthru
        _
    $region6: #{tpu_custom_call.1} parent=1 // loop_footer
      %s20 = sadd.s32 1, %s16
    $region7: #{tpu_custom_call.1} parent=1 // loop_footer_branch
      %15 = sbr.rel target = $region3
    $region8: #{tpu_custom_call.1} parent=1 // loop_exit
      _
    %744 = vsyncpa [#allocation3], 1
    %s745 = scalar_lea.sflag [#allocation3], 1
    %746 = vsyncpa %s745, 1
    %747 = vsyncpa [#allocation5], 1
    %s748 = scalar_lea.sflag [#allocation5], 1
    %749 = vsyncpa %s748, 1

</llo_original>
